<compile_context>
chip_gen: v7x
topology: tpu7x:2x2x1
jax: 0.10.0
libtpu: 0.0.40
codegen_flags: <defaults>
</compile_context>

<pallas_src>
import jax
import jax.numpy as jnp
from jax import lax
from jax.experimental import pallas as pl
from jax.experimental.pallas import tpu as pltpu


def _gp_kernel(alpha_ref, olens_ref, real_ref, fake_ref,
               w1_ref, b1_ref, w2_ref, gram_ref, out_ref):
    """One grid step = Bt whole batch elements = Bt*T fused matmul rows."""
    # --- interpolation: alpha * real + (1 - alpha) * fake (lane broadcast) --
    a = alpha_ref[...]                                        # (Bt, T, 1) f32
    x3 = a * real_ref[...] + (1.0 - a) * fake_ref[...]        # (Bt, T, Dp)
    bt, t, dp = x3.shape
    hp = w1_ref.shape[1]
    rows = bt * t

    # --- discriminator forward pieces (fused rows -> one big MXU pass) ------
    # T is padded to a multiple of 8, Dp/Hp to 128, so this collapse is
    # layout-free.
    x2 = x3.reshape(rows, dp)
    z = jnp.dot(x2, w1_ref[...],
                preferred_element_type=jnp.float32) + b1_ref[...]   # (rows,Hp)
    h = jnp.tanh(z)

    # --- analytic input gradient, Gram form ---------------------------------
    # d netD / d x_t = mask_t * (u_t @ W1^T),  u_t = (1 - h_t^2) * w2
    # ||d netD / d x_t||^2 = mask_t * u_t (W1^T W1) u_t^T   (gram = W1^T W1,
    # mask in {0,1} so it factors out of the quadratic form) -> no transpose,
    # no (rows, Dp) grad materialization.
    u = (1.0 - h * h) * w2_ref[...]                           # (rows, Hp)
    g = jnp.dot(u, gram_ref[...], preferred_element_type=jnp.float32)
    p = (g * u).reshape(bt, t, hp)                            # per-(b,t,h)

    # valid-timestep mask from olens (padded frames / padded H contribute 0)
    t_iota = lax.broadcasted_iota(jnp.int32, (bt, t, 1), 1)
    mask = (t_iota < olens_ref[...]).astype(jnp.float32)      # (Bt, T, 1)

    # per-batch-element squared grad norm, penalty
    s1 = jnp.sum(p * mask, axis=2)                            # (Bt, T)
    sq = jnp.sum(s1, axis=1, keepdims=True)                   # (Bt, 1)
    gp = (jnp.sqrt(sq) - 1.0) ** 2                            # (Bt, 1)

    # lane-dense, unmasked store; no cross-step carry.
    out_ref[...] = jnp.broadcast_to(gp, out_ref.shape)        # (1, Bt, 128)


def _round_up(x, m):
    return ((x + m - 1) // m) * m


def gradient_penalty(real, fake, alpha, olens, w1, b1, w2, gp_beta,
                     *, block_batch=None):
    B, T, D = real.shape
    H = w1.shape[1]
    f32 = jnp.float32

    # lane-dense padding: features -> multiples of 128, time -> multiple of 8
    Dp = _round_up(max(D, 128), 128)
    Hp = _round_up(max(H, 128), 128)
    Tp = _round_up(T, 8)

    # batch elements per grid step: target ~512 fused matmul rows
    if block_batch is None:
        block_batch = max(1, 512 // Tp)
    Bt = min(block_batch, B)
    nb = pl.cdiv(B, Bt)
    Bp = nb * Bt

    # zero-padded inputs (padded batch rows have olens=0 and are sliced away)
    real_p = jnp.zeros((Bp, Tp, Dp), f32).at[:B, :T, :D].set(real.astype(f32))
    fake_p = jnp.zeros((Bp, Tp, Dp), f32).at[:B, :T, :D].set(fake.astype(f32))
    alpha_p = jnp.zeros((Bp, Tp, 1), f32).at[:B].set(
        jnp.broadcast_to(alpha.astype(f32), (B, Tp, 1)))
    olens_p = jnp.zeros((Bp, Tp, 1), jnp.int32).at[:B].set(
        jnp.broadcast_to(olens.reshape(B, 1, 1).astype(jnp.int32), (B, Tp, 1)))
    w1_p = jnp.zeros((Dp, Hp), f32).at[:D, :H].set(w1.astype(f32))
    b1_p = jnp.zeros((1, Hp), f32).at[:, :H].set(b1.astype(f32))
    w2_p = jnp.zeros((1, Hp), f32).at[:, :H].set(w2.astype(f32))
    gram = w1_p.T @ w1_p                      # (Hp, Hp): W1^T W1, computed once

    grid_spec = pltpu.PrefetchScalarGridSpec(
        num_scalar_prefetch=0,
        grid=(nb,),
        in_specs=[
            pl.BlockSpec((Bt, Tp, 1), lambda i: (i, 0, 0)),    # alpha (per row)
            pl.BlockSpec((Bt, Tp, 1), lambda i: (i, 0, 0)),    # olens (per row)
            pl.BlockSpec((Bt, Tp, Dp), lambda i: (i, 0, 0)),   # real
            pl.BlockSpec((Bt, Tp, Dp), lambda i: (i, 0, 0)),   # fake
            pl.BlockSpec((Dp, Hp), lambda i: (0, 0)),          # W1  (DMA'd once)
            pl.BlockSpec((1, Hp), lambda i: (0, 0)),           # b1
            pl.BlockSpec((1, Hp), lambda i: (0, 0)),           # w2
            pl.BlockSpec((Hp, Hp), lambda i: (0, 0)),          # W1^T W1
        ],
        out_specs=pl.BlockSpec((1, Bt, 128), lambda i: (i, 0, 0)),
    )

    gp_blocks = pl.pallas_call(
        _gp_kernel,
        out_shape=jax.ShapeDtypeStruct((nb, Bt, 128), f32),
        grid_spec=grid_spec,
        compiler_params=pltpu.CompilerParams(
            dimension_semantics=("parallel",)),   # no carry -> both TCs on v7x
    )(alpha_p, olens_p, real_p, fake_p, w1_p, b1_p, w2_p, gram)

    gp_per_b = gp_blocks.reshape(Bp, 128)[:B, 0]
    return jnp.mean(gp_per_b) * gp_beta


# ---------------------------- pure-JAX reference ----------------------------
def _netD_ref(x, olens, w1, b1, w2):
    h = jnp.tanh(x @ w1 + b1)                          # (B,T,H)
    score = jnp.einsum('bth,h->bt', h, w2[0])          # (B,T)
    T = x.shape[1]
    mask = (jnp.arange(T)[None, :] < olens[:, None]).astype(x.dtype)
    return jnp.sum(score * mask, axis=1)               # (B,)


def _gp_ref(real, fake, alpha, olens, w1, b1, w2, gp_beta):
    interp = alpha * real + (1.0 - alpha) * fake
    # grad_outputs = ones  <=>  grad of sum of disc outputs
    grads = jax.grad(lambda xi: jnp.sum(_netD_ref(xi, olens, w1, b1, w2)))(interp)
    gp = (jnp.sqrt(jnp.sum(jnp.sum(grads ** 2, axis=2), axis=1)) - 1.0) ** 2
    return jnp.mean(gp) * gp_beta


if __name__ == "__main__":
    B, T, D, H = 4, 16, 80, 32
    GP_BEATA = 10.0

    key = jax.random.PRNGKey(0)
    k_real, k_fake, k_alpha, k_w1, k_b1, k_w2 = jax.random.split(key, 6)

    real = jax.random.normal(k_real, (B, T, D), dtype=jnp.float32)
    fake = jax.random.normal(k_fake, (B, T, D), dtype=jnp.float32)
    alpha = jax.random.uniform(k_alpha, (B, 1, 1), dtype=jnp.float32)  # torch.rand(B,1,1)
    olens = jnp.array([T, T - 3, T - 9, 5], dtype=jnp.int32)

    # deterministic synthetic discriminator parameters
    w1 = 0.1 * jax.random.normal(k_w1, (D, H), dtype=jnp.float32)
    b1 = 0.1 * jax.random.normal(k_b1, (1, H), dtype=jnp.float32)
    w2 = 0.1 * jax.random.normal(k_w2, (1, H), dtype=jnp.float32)

    # block_batch=2 -> 2 grid steps in the demo (production: auto ~512 rows/step)
    out = gradient_penalty(real, fake, alpha, olens, w1, b1, w2, GP_BEATA,
                           block_batch=2)
    out = jax.block_until_ready(out)

    ref = _gp_ref(real, fake, alpha, olens, w1, b1, w2, GP_BEATA)
    assert jnp.allclose(out, ref, rtol=1e-3, atol=1e-3), (out, ref)

    print("KERNEL_OK")
</pallas_src>

<mosaic_0001>
module attributes {stable_mosaic.version = 11 : i64} {
  func.func @_gp_kernel(%arg0: i32, %arg1: memref<2x16x1xf32, #tpu.memory_space<vmem>>, %arg2: memref<2x16x1xi32, #tpu.memory_space<vmem>>, %arg3: memref<2x16x128xf32, #tpu.memory_space<vmem>>, %arg4: memref<2x16x128xf32, #tpu.memory_space<vmem>>, %arg5: memref<128x128xf32, #tpu.memory_space<vmem>>, %arg6: memref<1x128xf32, #tpu.memory_space<vmem>>, %arg7: memref<1x128xf32, #tpu.memory_space<vmem>>, %arg8: memref<128x128xf32, #tpu.memory_space<vmem>>, %arg9: memref<1x2x128xf32, #tpu.memory_space<vmem>>) attributes {dimension_semantics = [#tpu.dimension_semantics<parallel>], iteration_bounds = array<i64: 2>, scalar_prefetch = 0 : i64, scratch_operands = 0 : i64, tpu.core_type = #tpu.core_type<tc>, window_params = [{transform_indices = @transform_0, window_bounds = array<i64: 2, 16, 1>}, {transform_indices = @transform_1, window_bounds = array<i64: 2, 16, 1>}, {transform_indices = @transform_2, window_bounds = array<i64: 2, 16, 128>}, {transform_indices = @transform_3, window_bounds = array<i64: 2, 16, 128>}, {pipeline_mode = #tpu.pipeline_mode<synchronous>, transform_indices = @transform_4, window_bounds = array<i64: 128, 128>}, {pipeline_mode = #tpu.pipeline_mode<synchronous>, transform_indices = @transform_5, window_bounds = array<i64: 1, 128>}, {pipeline_mode = #tpu.pipeline_mode<synchronous>, transform_indices = @transform_6, window_bounds = array<i64: 1, 128>}, {pipeline_mode = #tpu.pipeline_mode<synchronous>, transform_indices = @transform_7, window_bounds = array<i64: 128, 128>}, {transform_indices = @transform_8, window_bounds = array<i64: 1, 2, 128>}]} {
    %c0 = arith.constant 0 : index
    %c0_0 = arith.constant 0 : index
    %c0_1 = arith.constant 0 : index
    %0 = vector.load %arg1[%c0, %c0_0, %c0_1] : memref<2x16x1xf32, #tpu.memory_space<vmem>>, vector<2x16x1xf32>
    %c0_2 = arith.constant 0 : index
    %c0_3 = arith.constant 0 : index
    %c0_4 = arith.constant 0 : index
    %1 = vector.load %arg3[%c0_2, %c0_3, %c0_4] : memref<2x16x128xf32, #tpu.memory_space<vmem>>, vector<2x16x128xf32>
    %2 = vector.broadcast %0 : vector<2x16x1xf32> to vector<2x16x128xf32>
    %3 = arith.mulf %2, %1 : vector<2x16x128xf32>
    %cst = arith.constant 1.000000e+00 : f32
    %4 = vector.broadcast %cst : f32 to vector<2x16x1xf32>
    %5 = arith.subf %4, %0 : vector<2x16x1xf32>
    %c0_5 = arith.constant 0 : index
    %c0_6 = arith.constant 0 : index
    %c0_7 = arith.constant 0 : index
    %6 = vector.load %arg4[%c0_5, %c0_6, %c0_7] : memref<2x16x128xf32, #tpu.memory_space<vmem>>, vector<2x16x128xf32>
    %7 = vector.broadcast %5 : vector<2x16x1xf32> to vector<2x16x128xf32>
    %8 = arith.mulf %7, %6 : vector<2x16x128xf32>
    %9 = arith.addf %3, %8 : vector<2x16x128xf32>
    %10 = vector.shape_cast %9 : vector<2x16x128xf32> to vector<32x128xf32>
    %c0_8 = arith.constant 0 : index
    %c0_9 = arith.constant 0 : index
    %11 = vector.load %arg5[%c0_8, %c0_9] : memref<128x128xf32, #tpu.memory_space<vmem>>, vector<128x128xf32>
    %cst_10 = arith.constant dense<0.000000e+00> : vector<32x128xf32>
    %12 = tpu.matmul %10, %11, %cst_10 {dimension_numbers = #tpu.dot_dimension_numbers<[1], [0], [0], [1], [0, 0, 1, 1], [], []>} : vector<32x128xf32>, vector<128x128xf32>, vector<32x128xf32> -> vector<32x128xf32>
    %c0_11 = arith.constant 0 : index
    %c0_12 = arith.constant 0 : index
    %13 = vector.load %arg6[%c0_11, %c0_12] : memref<1x128xf32, #tpu.memory_space<vmem>>, vector<1x128xf32>
    %14 = vector.broadcast %13 : vector<1x128xf32> to vector<32x128xf32>
    %15 = arith.addf %12, %14 : vector<32x128xf32>
    %16 = math.tanh %15 : vector<32x128xf32>
    %17 = arith.mulf %16, %16 : vector<32x128xf32>
    %cst_13 = arith.constant 1.000000e+00 : f32
    %18 = vector.broadcast %cst_13 : f32 to vector<32x128xf32>
    %19 = arith.subf %18, %17 : vector<32x128xf32>
    %c0_14 = arith.constant 0 : index
    %c0_15 = arith.constant 0 : index
    %20 = vector.load %arg7[%c0_14, %c0_15] : memref<1x128xf32, #tpu.memory_space<vmem>>, vector<1x128xf32>
    %21 = vector.broadcast %20 : vector<1x128xf32> to vector<32x128xf32>
    %22 = arith.mulf %19, %21 : vector<32x128xf32>
    %c0_16 = arith.constant 0 : index
    %c0_17 = arith.constant 0 : index
    %23 = vector.load %arg8[%c0_16, %c0_17] : memref<128x128xf32, #tpu.memory_space<vmem>>, vector<128x128xf32>
    %cst_18 = arith.constant dense<0.000000e+00> : vector<32x128xf32>
    %24 = tpu.matmul %22, %23, %cst_18 {dimension_numbers = #tpu.dot_dimension_numbers<[1], [0], [0], [1], [0, 0, 1, 1], [], []>} : vector<32x128xf32>, vector<128x128xf32>, vector<32x128xf32> -> vector<32x128xf32>
    %25 = arith.mulf %24, %22 : vector<32x128xf32>
    %26 = vector.shape_cast %25 : vector<32x128xf32> to vector<2x16x128xf32>
    %27 = tpu.iota {dimensions = array<i32: 1>} : vector<2x16x1xi32>
    %c0_19 = arith.constant 0 : index
    %c0_20 = arith.constant 0 : index
    %c0_21 = arith.constant 0 : index
    %28 = vector.load %arg2[%c0_19, %c0_20, %c0_21] : memref<2x16x1xi32, #tpu.memory_space<vmem>>, vector<2x16x1xi32>
    %29 = arith.cmpi slt, %27, %28 : vector<2x16x1xi32>
    %30 = arith.extui %29 : vector<2x16x1xi1> to vector<2x16x1xi32>
    %31 = arith.sitofp %30 : vector<2x16x1xi32> to vector<2x16x1xf32>
    %32 = vector.broadcast %31 : vector<2x16x1xf32> to vector<2x16x128xf32>
    %33 = arith.mulf %26, %32 : vector<2x16x128xf32>
    %cst_22 = arith.constant dense<0.000000e+00> : vector<2x16xf32>
    %34 = vector.multi_reduction <add>, %33, %cst_22 [2] : vector<2x16x128xf32> to vector<2x16xf32>
    %cst_23 = arith.constant dense<0.000000e+00> : vector<2xf32>
    %35 = vector.multi_reduction <add>, %34, %cst_23 [1] : vector<2x16xf32> to vector<2xf32>
    %36 = vector.shape_cast %35 : vector<2xf32> to vector<2x1xf32>
    %37 = math.sqrt %36 : vector<2x1xf32>
    %cst_24 = arith.constant 1.000000e+00 : f32
    %38 = vector.broadcast %cst_24 : f32 to vector<2x1xf32>
    %39 = arith.subf %37, %38 : vector<2x1xf32>
    %40 = arith.mulf %39, %39 : vector<2x1xf32>
    %41 = vector.shape_cast %40 : vector<2x1xf32> to vector<1x2x1xf32>
    %42 = vector.broadcast %41 : vector<1x2x1xf32> to vector<1x2x128xf32>
    %c0_25 = arith.constant 0 : index
    %c0_26 = arith.constant 0 : index
    %c0_27 = arith.constant 0 : index
    %43 = vector.load %arg9[%c0_25, %c0_26, %c0_27] : memref<1x2x128xf32, #tpu.memory_space<vmem>>, vector<1x2x128xf32>
    tpu.vector_store %arg9[%c0_25, %c0_26, %c0_27], %42 {strides = array<i32>} : memref<1x2x128xf32, #tpu.memory_space<vmem>>, vector<1x2x128xf32>,
    return
  }
  func.func @transform_0(%arg0: i32) -> (i32, i32, i32) {
    %c0_i32 = arith.constant 0 : i32
    %c0_i32_0 = arith.constant 0 : i32
    %c0_i32_1 = arith.constant 0 : i32
    return %arg0, %c0_i32, %c0_i32_0 : i32, i32, i32
  }
  func.func @transform_1(%arg0: i32) -> (i32, i32, i32) {
    %c0_i32 = arith.constant 0 : i32
    %c0_i32_0 = arith.constant 0 : i32
    %c0_i32_1 = arith.constant 0 : i32
    return %arg0, %c0_i32, %c0_i32_0 : i32, i32, i32
  }
  func.func @transform_2(%arg0: i32) -> (i32, i32, i32) {
    %c0_i32 = arith.constant 0 : i32
    %c0_i32_0 = arith.constant 0 : i32
    %c0_i32_1 = arith.constant 0 : i32
    return %arg0, %c0_i32, %c0_i32_0 : i32, i32, i32
  }
  func.func @transform_3(%arg0: i32) -> (i32, i32, i32) {
    %c0_i32 = arith.constant 0 : i32
    %c0_i32_0 = arith.constant 0 : i32
    %c0_i32_1 = arith.constant 0 : i32
    return %arg0, %c0_i32, %c0_i32_0 : i32, i32, i32
  }
  func.func @transform_4(%arg0: i32) -> (i32, i32) {
    %c0_i32 = arith.constant 0 : i32
    %c0_i32_0 = arith.constant 0 : i32
    %c0_i32_1 = arith.constant 0 : i32
    return %c0_i32, %c0_i32_0 : i32, i32
  }
  func.func @transform_5(%arg0: i32) -> (i32, i32) {
    %c0_i32 = arith.constant 0 : i32
    %c0_i32_0 = arith.constant 0 : i32
    %c0_i32_1 = arith.constant 0 : i32
    return %c0_i32, %c0_i32_0 : i32, i32
  }
  func.func @transform_6(%arg0: i32) -> (i32, i32) {
    %c0_i32 = arith.constant 0 : i32
    %c0_i32_0 = arith.constant 0 : i32
    %c0_i32_1 = arith.constant 0 : i32
    return %c0_i32, %c0_i32_0 : i32, i32
  }
  func.func @transform_7(%arg0: i32) -> (i32, i32) {
    %c0_i32 = arith.constant 0 : i32
    %c0_i32_0 = arith.constant 0 : i32
    %c0_i32_1 = arith.constant 0 : i32
    return %c0_i32, %c0_i32_0 : i32, i32
  }
  func.func @transform_8(%arg0: i32) -> (i32, i32, i32) {
    %c0_i32 = arith.constant 0 : i32
    %c0_i32_0 = arith.constant 0 : i32
    %c0_i32_1 = arith.constant 0 : i32
    return %arg0, %c0_i32, %c0_i32_0 : i32, i32, i32
  }
}

</mosaic_0001>

<llo_original>
// kernel: tpu_custom_call.1
$region0: #{tpu_custom_call.1}
  #allocation0 [shape = 'u32[]', space=smem, size = 0x4, offset = 0x4, fixed_abs, tag = 'smem constant byte address 0x4 - core index']
  #allocation1 [shape = 'u32[144,128]{1,0:T(1,128)}', space=vmem, size = 0x12000, scoped, tag = 'internal scratch']
  %s0 = inlined_call_operand.vmem [shape: f32[4,16,1], index: 0, kind: input, shape index: {}]
  %s1 = inlined_call_operand.vmem [shape: s32[4,16,1], index: 1, kind: input, shape index: {}]
  %s2 = inlined_call_operand.hbm [shape: f32[4,16,128], index: 2, kind: input, shape index: {}]
  %s3 = inlined_call_operand.hbm [shape: f32[4,16,128], index: 3, kind: input, shape index: {}]
  %s4 = inlined_call_operand.vmem [shape: f32[128,128], index: 4, kind: input, shape index: {}]
  %s5 = inlined_call_operand.vmem [shape: f32[1,128], index: 5, kind: input, shape index: {}]
  %s6 = inlined_call_operand.vmem [shape: f32[1,128], index: 6, kind: input, shape index: {}]
  %s7 = inlined_call_operand.hbm [shape: f32[128,128], index: 7, kind: input, shape index: {}]
  %s8 = inlined_call_operand.hbm [shape: f32[2,2,128], index: 8, kind: output, shape index: {}]
  %s9 = sld [smem:[#allocation0]]
  $region77: #{tpu_custom_call.1} parent=0
    _
  %s11 = ssub.s32 1, %s9
  %s12 = scalar_select 0, %s11, %s9
  $region1: #{tpu_custom_call.1} parent=0
    #allocation2 [shape = 'u8[32768]{0}', space=vmem, size = 0x8000, scoped, tag = 'input window, operand 2']
    #allocation3 [shape = 's32[2]{0}', space=sflag, size = 0x8, scoped, tag = 'scoped memory for tpu_custom_call.1']
    #allocation4 [shape = 's32[2]{0}', space=sflag, size = 0x8, scoped, tag = 'scoped memory for tpu_custom_call.1']
    #allocation5 [shape = 'u8[32768]{0}', space=vmem, size = 0x8000, scoped, tag = 'input window, operand 3']
    #allocation6 [shape = 's32[2]{0}', space=sflag, size = 0x8, scoped, tag = 'scoped memory for tpu_custom_call.1']
    #allocation7 [shape = 'u8[65536]{0}', space=vmem, size = 0x10000, scoped, tag = 'input window, operand 7, single buffered']
    #allocation8 [shape = 'u8[2048]{0}', space=vmem, size = 0x800, scoped, tag = 'output window, operand 0']
    %13 = vsyncpa [#allocation3], 0
    %s14 = scalar_lea.sflag [#allocation3], 1
    %15 = vsyncpa %s14, 0
    %16 = vsyncpa [#allocation6], 0
    %s17 = scalar_lea.sflag [#allocation6], 1
    %18 = vsyncpa %s17, 0
    %19 = vsyncpa [#allocation4], 0
    %s20 = scalar_lea.sflag [#allocation4], 1
    %21 = vsyncpa %s20, 0
    loop: start=0, step=1, limit=4
    $region2: #{tpu_custom_call.1} parent=1 // loop_pre_header
      _
    $region3: #{tpu_custom_call.1} parent=1 // loop_header
      %s23 = sphi 0, %s27
      %p24 = scmp.ge.s32.totalorder %s23, 4
      %s33 = sphi 0, %s35
      %s36 = sphi 0, %s33
      %s37 = sphi 0, %s36
      %s53 = sphi 0, %s37
      %s59 = sphi 0, %s61
      %s62 = sphi 0, %s59
      %s63 = sphi 0, %s62
      %s79 = sphi 0, %s63
      %s85 = sphi 0, %s87
      %s88 = sphi 0, %s85
      %s89 = sphi 0, %s88
      %s105 = sphi 0, %s89
      %s111 = sphi 0, %s113
      %s114 = sphi 0, %s111
      %s115 = sphi 0, %s114
      %s131 = sphi 0, %s115
      %s135 = sphi 0, %s135
      %s137 = sphi 0, %s135
      %s138 = sphi 0, %s137
      %s152 = sphi 0, %s138
      %s156 = sphi 0, %s156
      %s158 = sphi 0, %s156
      %s159 = sphi 0, %s158
      %s173 = sphi 0, %s159
      %s177 = sphi 0, %s177
      %s179 = sphi 0, %s177
      %s180 = sphi 0, %s179
      %s194 = sphi 0, %s180
      %s198 = sphi 0, %s198
      %s200 = sphi 0, %s198
      %s201 = sphi 0, %s200
      %s215 = sphi 0, %s201
      %s221 = sphi 0, %s223
      %s224 = sphi 0, %s221
      %s225 = sphi 0, %s224
      %s241 = sphi 0, %s225
    $region4: #{tpu_custom_call.1} parent=1 // loop_header_branch
      %26 = sbr.rel (%p24) target = $region8
    $region5: #{tpu_custom_call.1} parent=1 // loop_body
      %s28 = ssub.s32 %s23, 1
      %s29 = ssub.s32 %s23, 2
      %s30 = sadd.s32 %s23, 1
      %s31 = ssub.s32 %s23, %s30
      %p32 = scmp.eq.s32.totalorder %s31, 0
      %s34 = sadd.s32 %s33, 1
      %s35 = scalar_select %p32, %s33, %s34
      %p38 = pneg %p32
      %p39 = scmp.eq.s32.totalorder %s23, 1
      %p40 = por %p38, %p39
      %p41 = scmp.ne.s32.totalorder %s33, %s36
      %p42 = scmp.eq.s32.totalorder %s23, 0
      %p43 = por %p41, %p42
      %p44 = scmp.ne.s32.totalorder %s33, %s36
      %p45 = scmp.eq.s32.totalorder %s28, 1
      %p46 = por %p44, %p45
      %p47 = scmp.ne.s32.totalorder %s36, %s37
      %p48 = scmp.eq.s32.totalorder %s28, 0
      %p49 = por %p47, %p48
      %p50 = scmp.ne.s32.totalorder %s36, %s37
      %p51 = scmp.eq.s32.totalorder %s29, 1
      %p52 = por %p50, %p51
      %p54 = scmp.ne.s32.totalorder %s37, %s53
      %p55 = scmp.eq.s32.totalorder %s29, 0
      %p56 = por %p54, %p55
      %s57 = ssub.s32 %s23, %s30
      %p58 = scmp.eq.s32.totalorder %s57, 0
      %s60 = sadd.s32 %s59, 1
      %s61 = scalar_select %p58, %s59, %s60
      %p64 = pneg %p58
      %p65 = scmp.eq.s32.totalorder %s23, 1
      %p66 = por %p64, %p65
      %p67 = scmp.ne.s32.totalorder %s59, %s62
      %p68 = scmp.eq.s32.totalorder %s23, 0
      %p69 = por %p67, %p68
      %p70 = scmp.ne.s32.totalorder %s59, %s62
      %p71 = scmp.eq.s32.totalorder %s28, 1
      %p72 = por %p70, %p71
      %p73 = scmp.ne.s32.totalorder %s62, %s63
      %p74 = scmp.eq.s32.totalorder %s28, 0
      %p75 = por %p73, %p74
      %p76 = scmp.ne.s32.totalorder %s62, %s63
      %p77 = scmp.eq.s32.totalorder %s29, 1
      %p78 = por %p76, %p77
      %p80 = scmp.ne.s32.totalorder %s63, %s79
      %p81 = scmp.eq.s32.totalorder %s29, 0
      %p82 = por %p80, %p81
      %s83 = ssub.s32 %s23, %s30
      %p84 = scmp.eq.s32.totalorder %s83, 0
      %s86 = sadd.s32 %s85, 1
      %s87 = scalar_select %p84, %s85, %s86
      %p90 = pneg %p84
      %p91 = scmp.eq.s32.totalorder %s23, 1
      %p92 = por %p90, %p91
      %p93 = scmp.ne.s32.totalorder %s85, %s88
      %p94 = scmp.eq.s32.totalorder %s23, 0
      %p95 = por %p93, %p94
      %p96 = scmp.ne.s32.totalorder %s85, %s88
      %p97 = scmp.eq.s32.totalorder %s28, 1
      %p98 = por %p96, %p97
      %p99 = scmp.ne.s32.totalorder %s88, %s89
      %p100 = scmp.eq.s32.totalorder %s28, 0
      %p101 = por %p99, %p100
      %p102 = scmp.ne.s32.totalorder %s88, %s89
      %p103 = scmp.eq.s32.totalorder %s29, 1
      %p104 = por %p102, %p103
      %p106 = scmp.ne.s32.totalorder %s89, %s105
      %p107 = scmp.eq.s32.totalorder %s29, 0
      %p108 = por %p106, %p107
      %s109 = ssub.s32 %s23, %s30
      %p110 = scmp.eq.s32.totalorder %s109, 0
      %s112 = sadd.s32 %s111, 1
      %s113 = scalar_select %p110, %s111, %s112
      %p116 = pneg %p110
      %p117 = scmp.eq.s32.totalorder %s23, 1
      %p118 = por %p116, %p117
      %p119 = scmp.ne.s32.totalorder %s111, %s114
      %p120 = scmp.eq.s32.totalorder %s23, 0
      %p121 = por %p119, %p120
      %p122 = scmp.ne.s32.totalorder %s111, %s114
      %p123 = scmp.eq.s32.totalorder %s28, 1
      %p124 = por %p122, %p123
      %p125 = scmp.ne.s32.totalorder %s114, %s115
      %p126 = scmp.eq.s32.totalorder %s28, 0
      %p127 = por %p125, %p126
      %p128 = scmp.ne.s32.totalorder %s114, %s115
      %p129 = scmp.eq.s32.totalorder %s29, 1
      %p130 = por %p128, %p129
      %p132 = scmp.ne.s32.totalorder %s115, %s131
      %p133 = scmp.eq.s32.totalorder %s29, 0
      %p134 = por %p132, %p133
      %s136 = sadd.s32 %s135, 1
      %p139 = scmp.eq.s32.totalorder %s23, 1
      %p140 = scmp.ne.s32.totalorder %s135, %s137
      %p141 = scmp.eq.s32.totalorder %s23, 0
      %p142 = por %p140, %p141
      %p143 = scmp.ne.s32.totalorder %s135, %s137
      %p144 = scmp.eq.s32.totalorder %s28, 1
      %p145 = por %p143, %p144
      %p146 = scmp.ne.s32.totalorder %s137, %s138
      %p147 = scmp.eq.s32.totalorder %s28, 0
      %p148 = por %p146, %p147
      %p149 = scmp.ne.s32.totalorder %s137, %s138
      %p150 = scmp.eq.s32.totalorder %s29, 1
      %p151 = por %p149, %p150
      %p153 = scmp.ne.s32.totalorder %s138, %s152
      %p154 = scmp.eq.s32.totalorder %s29, 0
      %p155 = por %p153, %p154
      %s157 = sadd.s32 %s156, 1
      %p160 = scmp.eq.s32.totalorder %s23, 1
      %p161 = scmp.ne.s32.totalorder %s156, %s158
      %p162 = scmp.eq.s32.totalorder %s23, 0
      %p163 = por %p161, %p162
      %p164 = scmp.ne.s32.totalorder %s156, %s158
      %p165 = scmp.eq.s32.totalorder %s28, 1
      %p166 = por %p164, %p165
      %p167 = scmp.ne.s32.totalorder %s158, %s159
      %p168 = scmp.eq.s32.totalorder %s28, 0
      %p169 = por %p167, %p168
      %p170 = scmp.ne.s32.totalorder %s158, %s159
      %p171 = scmp.eq.s32.totalorder %s29, 1
      %p172 = por %p170, %p171
      %p174 = scmp.ne.s32.totalorder %s159, %s173
      %p175 = scmp.eq.s32.totalorder %s29, 0
      %p176 = por %p174, %p175
      %s178 = sadd.s32 %s177, 1
      %p181 = scmp.eq.s32.totalorder %s23, 1
      %p182 = scmp.ne.s32.totalorder %s177, %s179
      %p183 = scmp.eq.s32.totalorder %s23, 0
      %p184 = por %p182, %p183
      %p185 = scmp.ne.s32.totalorder %s177, %s179
      %p186 = scmp.eq.s32.totalorder %s28, 1
      %p187 = por %p185, %p186
      %p188 = scmp.ne.s32.totalorder %s179, %s180
      %p189 = scmp.eq.s32.totalorder %s28, 0
      %p190 = por %p188, %p189
      %p191 = scmp.ne.s32.totalorder %s179, %s180
      %p192 = scmp.eq.s32.totalorder %s29, 1
      %p193 = por %p191, %p192
      %p195 = scmp.ne.s32.totalorder %s180, %s194
      %p196 = scmp.eq.s32.totalorder %s29, 0
      %p197 = por %p195, %p196
      %s199 = sadd.s32 %s198, 1
      %p202 = scmp.eq.s32.totalorder %s23, 1
      %p203 = scmp.ne.s32.totalorder %s198, %s200
      %p204 = scmp.eq.s32.totalorder %s23, 0
      %p205 = por %p203, %p204
      %p206 = scmp.ne.s32.totalorder %s198, %s200
      %p207 = scmp.eq.s32.totalorder %s28, 1
      %p208 = por %p206, %p207
      %p209 = scmp.ne.s32.totalorder %s200, %s201
      %p210 = scmp.eq.s32.totalorder %s28, 0
      %p211 = por %p209, %p210
      %p212 = scmp.ne.s32.totalorder %s200, %s201
      %p213 = scmp.eq.s32.totalorder %s29, 1
      %p214 = por %p212, %p213
      %p216 = scmp.ne.s32.totalorder %s201, %s215
      %p217 = scmp.eq.s32.totalorder %s29, 0
      %p218 = por %p216, %p217
      %s219 = ssub.s32 %s23, %s30
      %p220 = scmp.eq.s32.totalorder %s219, 0
      %s222 = sadd.s32 %s221, 1
      %s223 = scalar_select %p220, %s221, %s222
      %p226 = pneg %p220
      %p227 = scmp.eq.s32.totalorder %s23, 1
      %p228 = por %p226, %p227
      %p229 = scmp.ne.s32.totalorder %s221, %s224
      %p230 = scmp.eq.s32.totalorder %s23, 0
      %p231 = por %p229, %p230
      %p232 = scmp.ne.s32.totalorder %s221, %s224
      %p233 = scmp.eq.s32.totalorder %s28, 1
      %p234 = por %p232, %p233
      %p235 = scmp.ne.s32.totalorder %s224, %s225
      %p236 = scmp.eq.s32.totalorder %s28, 0
      %p237 = por %p235, %p236
      %p238 = scmp.ne.s32.totalorder %s224, %s225
      %p239 = scmp.eq.s32.totalorder %s29, 1
      %p240 = por %p238, %p239
      %p242 = scmp.ne.s32.totalorder %s225, %s241
      %p243 = scmp.eq.s32.totalorder %s29, 0
      %p244 = por %p242, %p243
      %p245 = scmp.le.s32.totalorder 1, %s23
      %p246 = scmp.lt.s32.totalorder %s23, 3
      %p247 = pnand %p245, %p246
      %p248 = pneg %p247
      // Predicated region
      $region9: #{tpu_custom_call.1} parent=5 // pred_check
        _
      $region10: #{tpu_custom_call.1} parent=5 // pred_check_branch
        %250 = sbr.rel (%p247) target = $region12
      $region11: #{tpu_custom_call.1} parent=5 // pred_region
        %s251 = ssub.s32 %s23, 1
        // Predicated region
        $region13: #{tpu_custom_call.1} parent=11 // pred_check
          %p252 = pneg %p148
        $region14: #{tpu_custom_call.1} parent=11 // pred_check_branch
          %254 = sbr.rel (%p252) target = $region16
        $region15: #{tpu_custom_call.1} parent=11 // pred_region
          _
        $region16: #{tpu_custom_call.1} parent=11 // pred_fallthru
          _
        // Predicated region
        $region17: #{tpu_custom_call.1} parent=11 // pred_check
          %p255 = pneg %p169
        $region18: #{tpu_custom_call.1} parent=11 // pred_check_branch
          %257 = sbr.rel (%p255) target = $region20
        $region19: #{tpu_custom_call.1} parent=11 // pred_region
          _
        $region20: #{tpu_custom_call.1} parent=11 // pred_fallthru
          _
        // Predicated region
        $region21: #{tpu_custom_call.1} parent=11 // pred_check
          %p258 = pneg %p190
        $region22: #{tpu_custom_call.1} parent=11 // pred_check_branch
          %260 = sbr.rel (%p258) target = $region24
        $region23: #{tpu_custom_call.1} parent=11 // pred_region
          _
        $region24: #{tpu_custom_call.1} parent=11 // pred_fallthru
          _
        // Predicated region
        $region25: #{tpu_custom_call.1} parent=11 // pred_check
          %p261 = pneg %p211
        $region26: #{tpu_custom_call.1} parent=11 // pred_check_branch
          %263 = sbr.rel (%p261) target = $region28
        $region27: #{tpu_custom_call.1} parent=11 // pred_region
          %s265 = ssub.s32 2048, 2048
          %266 = vsyncadd [#allocation6], %s265
          %s267 = sshll.u32 [#allocation7], 4
          %s268 = int_to_ptr.vmem [resolvable:$true] %s267
          %273 = dma.hbm_to_vmem [thread:$0]  %s7, 2048, %s268, [#allocation6], 128, 128, 8
        $region28: #{tpu_custom_call.1} parent=11 // pred_fallthru
          _
      $region12: #{tpu_custom_call.1} parent=5 // pred_fallthru
        _
      %p274 = scmp.lt.s32.totalorder %s23, 2
      // Predicated region
      $region29: #{tpu_custom_call.1} parent=5 // pred_check
        %p275 = pneg %p274
      $region30: #{tpu_custom_call.1} parent=5 // pred_check_branch
        %277 = sbr.rel (%p275) target = $region32
      $region31: #{tpu_custom_call.1} parent=5 // pred_region
        // Predicated region
        $region33: #{tpu_custom_call.1} parent=31 // pred_check
          %p278 = pneg %p43
        $region34: #{tpu_custom_call.1} parent=31 // pred_check_branch
          %280 = sbr.rel (%p278) target = $region36
        $region35: #{tpu_custom_call.1} parent=31 // pred_region
          %s281 = smul.u32 2, %s23
          %p282 = scmp.lt.s32.totalorder %s281, 3
          %s283 = scalar_select %p282, %s281, 3
          %s284 = smul.addr %s283, 2
          %s285 = smul.addr %s284, 8
          %s286 = scalar_lea.vmem %s0, %s285
          %s287 = smul.u32 2, %s23
        $region36: #{tpu_custom_call.1} parent=31 // pred_fallthru
          _
        // Predicated region
        $region37: #{tpu_custom_call.1} parent=31 // pred_check
          %p288 = pneg %p69
        $region38: #{tpu_custom_call.1} parent=31 // pred_check_branch
          %290 = sbr.rel (%p288) target = $region40
        $region39: #{tpu_custom_call.1} parent=31 // pred_region
          %s291 = smul.u32 2, %s23
          %p292 = scmp.lt.s32.totalorder %s291, 3
          %s293 = scalar_select %p292, %s291, 3
          %s294 = smul.addr %s293, 2
          %s295 = smul.addr %s294, 8
          %s296 = scalar_lea.vmem %s1, %s295
          %s297 = smul.u32 2, %s23
        $region40: #{tpu_custom_call.1} parent=31 // pred_fallthru
          _
        // Predicated region
        $region41: #{tpu_custom_call.1} parent=31 // pred_check
          %p298 = pneg %p95
        $region42: #{tpu_custom_call.1} parent=31 // pred_check_branch
          %300 = sbr.rel (%p298) target = $region44
        $region43: #{tpu_custom_call.1} parent=31 // pred_region
          %s301 = sand.u32 %s85, 1
          %s302 = scalar_lea.sflag [#allocation3], %s301
          %s303 = sand.u32 %s85, 1
          %s304 = smul.addr %s303, 32
          %s305 = scalar_lea.vmem [#allocation2], %s304
          %s306 = smul.u32 2, %s23
          %s308 = ssub.s32 512, 512
          %309 = vsyncadd %s302, %s308
          %s310 = smul.addr %s306, 2
          %s311 = smul.addr %s310, 128
          %s312 = scalar_lea.hbm %s2, %s311
          %s313 = sshll.u32 %s305, 4
          %s314 = int_to_ptr.vmem [resolvable:$true] %s313
          %319 = dma.hbm_to_vmem [thread:$0]  %s312, 512, %s314, %s302, 128, 128, 8
        $region44: #{tpu_custom_call.1} parent=31 // pred_fallthru
          _
        // Predicated region
        $region45: #{tpu_custom_call.1} parent=31 // pred_check
          %p320 = pneg %p121
        $region46: #{tpu_custom_call.1} parent=31 // pred_check_branch
          %322 = sbr.rel (%p320) target = $region48
        $region47: #{tpu_custom_call.1} parent=31 // pred_region
          %s323 = sand.u32 %s23, 1
          %s324 = scalar_lea.sflag [#allocation6], %s323
          %s325 = sand.u32 %s111, 1
          %s326 = smul.addr %s325, 32
          %s327 = scalar_lea.vmem [#allocation5], %s326
          %s328 = smul.u32 2, %s23
          %s330 = ssub.s32 512, 512
          %331 = vsyncadd %s324, %s330
          %s332 = smul.addr %s328, 2
          %s333 = smul.addr %s332, 128
          %s334 = scalar_lea.hbm %s3, %s333
          %s335 = sshll.u32 %s327, 4
          %s336 = int_to_ptr.vmem [resolvable:$true] %s335
          %341 = dma.hbm_to_vmem [thread:$0]  %s334, 512, %s336, %s324, 128, 128, 8
        $region48: #{tpu_custom_call.1} parent=31 // pred_fallthru
          _
      $region32: #{tpu_custom_call.1} parent=5 // pred_fallthru
        _
      %p342 = scmp.le.s32.totalorder 1, %s23
      %p343 = scmp.lt.s32.totalorder %s23, 3
      %p344 = pnand %p342, %p343
      %p345 = pneg %p344
      // Predicated region
      $region49: #{tpu_custom_call.1} parent=5 // pred_check
        _
      $region50: #{tpu_custom_call.1} parent=5 // pred_check_branch
        %347 = sbr.rel (%p344) target = $region52
      $region51: #{tpu_custom_call.1} parent=5 // pred_region
        %s348 = ssub.s32 %s23, 1
        %s349 = sand.u32 %s88, 1
        %s350 = scalar_lea.sflag [#allocation3], %s349
        %s351 = sand.u32 %s88, 1
        %s352 = smul.addr %s351, 32
        %s353 = scalar_lea.vmem [#allocation2], %s352
        // Predicated region
        $region53: #{tpu_custom_call.1} parent=51 // pred_check
          %p354 = pneg %p101
        $region54: #{tpu_custom_call.1} parent=51 // pred_check_branch
          %356 = sbr.rel (%p354) target = $region56
        $region55: #{tpu_custom_call.1} parent=51 // pred_region
          %357 = dma.done %s350, 512
        $region56: #{tpu_custom_call.1} parent=51 // pred_fallthru
          _
        %s358 = sand.u32 %s28, 1
        %s359 = scalar_lea.sflag [#allocation6], %s358
        %s360 = sand.u32 %s114, 1
        %s361 = smul.addr %s360, 32
        %s362 = scalar_lea.vmem [#allocation5], %s361
        // Predicated region
        $region57: #{tpu_custom_call.1} parent=51 // pred_check
          %p363 = pneg %p127
        $region58: #{tpu_custom_call.1} parent=51 // pred_check_branch
          %365 = sbr.rel (%p363) target = $region60
        $region59: #{tpu_custom_call.1} parent=51 // pred_region
          %366 = dma.done %s359, 512
        $region60: #{tpu_custom_call.1} parent=51 // pred_fallthru
          _
        // Predicated region
        $region61: #{tpu_custom_call.1} parent=51 // pred_check
          %p367 = pneg %p211
        $region62: #{tpu_custom_call.1} parent=51 // pred_check_branch
          %369 = sbr.rel (%p367) target = $region64
        $region63: #{tpu_custom_call.1} parent=51 // pred_region
          %370 = dma.done [#allocation6], 2048
        $region64: #{tpu_custom_call.1} parent=51 // pred_fallthru
          _
        %s371 = smul.u32 2, %s28
        %p372 = scmp.lt.s32.totalorder %s371, 3
        %s373 = scalar_select %p372, %s371, 3
        %s374 = smul.addr %s373, 2
        %s375 = smul.addr %s374, 8
        %s376 = scalar_lea.vmem %s0, %s375
        %p377 = pneg %p49
        %p378 = pneg %p46
        %s379 = smul.u32 2, %s28
        %p380 = scmp.lt.s32.totalorder %s379, 3
        %s381 = scalar_select %p380, %s379, 3
        %s382 = smul.addr %s381, 2
        %s383 = smul.addr %s382, 8
        %s384 = scalar_lea.vmem %s1, %s383
        %p385 = pneg %p75
        %p386 = pneg %p72
        %s387 = sand.u32 %s88, 1
        %s388 = scalar_lea.sflag [#allocation3], %s387
        %s389 = sand.u32 %s88, 1
        %s390 = smul.addr %s389, 32
        %s391 = scalar_lea.vmem [#allocation2], %s390
        %p392 = pneg %p101
        %p393 = pneg %p98
        %s394 = sand.u32 %s28, 1
        %s395 = scalar_lea.sflag [#allocation6], %s394
        %s396 = sand.u32 %s114, 1
        %s397 = smul.addr %s396, 32
        %s398 = scalar_lea.vmem [#allocation5], %s397
        %p399 = pneg %p127
        %p400 = pneg %p124
        %p401 = pneg %p148
        %p402 = pneg %p145
        %p403 = pneg %p169
        %p404 = pneg %p166
        %p405 = pneg %p190
        %p406 = pneg %p187
        %p407 = pneg %p211
        %p408 = pneg %p208
        %p409 = pneg %p237
        %p410 = pneg %p234
        %s411 = sand.u32 %s224, 1
        %s412 = scalar_lea.sflag [#allocation4], %s411
        %s413 = sand.u32 %s224, 1
        %s414 = smul.addr %s413, 2
        %s415 = scalar_lea.vmem [#allocation8], %s414
        %s416 = smul.u32 2, %s28
        %p417 = scmp.lt.s32.totalorder %s416, 3
        %s418 = scalar_select %p417, %s416, 3
        %s419 = smul.addr %s418, 2
        %s420 = smul.addr %s419, 8
        %s421 = scalar_lea.vmem %s0, %s420
        %s422 = smul.u32 2, %s28
        %s423 = smul.u32 2, %s28
        %p424 = scmp.lt.s32.totalorder %s423, 3
        %s425 = scalar_select %p424, %s423, 3
        %s426 = smul.addr %s425, 2
        %s427 = smul.addr %s426, 8
        %s428 = scalar_lea.vmem %s1, %s427
        %s429 = smul.u32 2, %s28
        %s430 = smul.u32 2, %s28
        %s431 = smul.u32 2, %s28
        %v432 = vld [vmem:[%s421] sm:$0xff]
        %v433 = vld [vmem:[%s421 + $0x8] sm:$0xff]
        %v434 = vld [vmem:[%s421 + $0x10] sm:$0xff]
        %v435 = vld [vmem:[%s421 + $0x18] sm:$0xff]
        %v436 = vld [vmem:[%s353] sm:$0xff]
        %v437 = vld [vmem:[%s353 + $0x8] sm:$0xff]
        %v438 = vld [vmem:[%s353 + $0x10] sm:$0xff]
        %v439 = vld [vmem:[%s353 + $0x18] sm:$0xff]
        %441 = vset.pattern.permute.xlu0 0
        %442 = vperm.xlu0 %441, %v432
        %v443 = vpop.permute.xlu0 %442
        %446 = vset.pattern.permute.xlu0 0
        %447 = vperm.xlu0 %446, %v433
        %v448 = vpop.permute.xlu0 %447
        %451 = vset.pattern.permute.xlu0 0
        %452 = vperm.xlu0 %451, %v434
        %v453 = vpop.permute.xlu0 %452
        %456 = vset.pattern.permute.xlu0 0
        %457 = vperm.xlu0 %456, %v435
        %v458 = vpop.permute.xlu0 %457
        %v460 = vmul.f32 %v443, %v436
        %v461 = vmul.f32 %v448, %v437
        %v462 = vmul.f32 %v453, %v438
        %v463 = vmul.f32 %v458, %v439
        %v464 = vsub.f32 1.0, %v432
        %v465 = vsub.f32 1.0, %v433
        %v466 = vsub.f32 1.0, %v434
        %v467 = vsub.f32 1.0, %v435
        %v468 = vld [vmem:[%s362] sm:$0xff]
        %v469 = vld [vmem:[%s362 + $0x8] sm:$0xff]
        %v470 = vld [vmem:[%s362 + $0x10] sm:$0xff]
        %v471 = vld [vmem:[%s362 + $0x18] sm:$0xff]
        %473 = vset.pattern.permute.xlu0 0
        %474 = vperm.xlu0 %473, %v464
        %v475 = vpop.permute.xlu0 %474
        %478 = vset.pattern.permute.xlu0 0
        %479 = vperm.xlu0 %478, %v465
        %v480 = vpop.permute.xlu0 %479
        %483 = vset.pattern.permute.xlu0 0
        %484 = vperm.xlu0 %483, %v466
        %v485 = vpop.permute.xlu0 %484
        %488 = vset.pattern.permute.xlu0 0
        %489 = vperm.xlu0 %488, %v467
        %v490 = vpop.permute.xlu0 %489
        %v492 = vmul.f32 %v475, %v468
        %v493 = vmul.f32 %v480, %v469
        %v494 = vmul.f32 %v485, %v470
        %v495 = vmul.f32 %v490, %v471
        %v496 = vadd.f32 %v460, %v492
        %v497 = vadd.f32 %v461, %v493
        %v498 = vadd.f32 %v462, %v494
        %v499 = vadd.f32 %v463, %v495
        %v500 = vld [vmem:[%s4] sm:$0xff]
        %v501 = vld [vmem:[%s4 + $0x8] sm:$0xff]
        %v502 = vld [vmem:[%s4 + $0x10] sm:$0xff]
        %v503 = vld [vmem:[%s4 + $0x18] sm:$0xff]
        %v504 = vld [vmem:[%s4 + $0x20] sm:$0xff]
        %v505 = vld [vmem:[%s4 + $0x28] sm:$0xff]
        %v506 = vld [vmem:[%s4 + $0x30] sm:$0xff]
        %v507 = vld [vmem:[%s4 + $0x38] sm:$0xff]
        %v508 = vld [vmem:[%s4 + $0x40] sm:$0xff]
        %v509 = vld [vmem:[%s4 + $0x48] sm:$0xff]
        %v510 = vld [vmem:[%s4 + $0x50] sm:$0xff]
        %v511 = vld [vmem:[%s4 + $0x58] sm:$0xff]
        %v512 = vld [vmem:[%s4 + $0x60] sm:$0xff]
        %v513 = vld [vmem:[%s4 + $0x68] sm:$0xff]
        %v514 = vld [vmem:[%s4 + $0x70] sm:$0xff]
        %v515 = vld [vmem:[%s4 + $0x78] sm:$0xff]
        %v516 = vld [vmem:[%s5] sm:$0x1]
        %v518 = vlaneseq
        %v519 = vshrl.u32 %v518, 7
        %v520 = vsub.s32 0, %v519
        %v521 = vrot.slane %v516, %v520
        %523 = vmatprep.subr.mxu0 0.0
        %524 = vmatpush1.msra.mxu0 %v500
        %525 = vmatprep.subr.mxu0 0.0
        %526 = vmatpush1.msra.mxu0 %v501
        %527 = vmatprep.subr.mxu0 0.0
        %528 = vmatpush1.msra.mxu0 %v502
        %529 = vmatprep.subr.mxu0 0.0
        %530 = vmatpush1.msra.mxu0 %v503
        %531 = vmatprep.subr.mxu0 0.0
        %532 = vmatpush1.msra.mxu0 %v504
        %533 = vmatprep.subr.mxu0 0.0
        %534 = vmatpush1.msra.mxu0 %v505
        %535 = vmatprep.subr.mxu0 0.0
        %536 = vmatpush1.msra.mxu0 %v506
        %537 = vmatprep.subr.mxu0 0.0
        %538 = vmatpush1.msra.mxu0 %v507
        %539 = vmatprep.subr.mxu0 0.0
        %540 = vmatpush1.msra.mxu0 %v508
        %541 = vmatprep.subr.mxu0 0.0
        %542 = vmatpush1.msra.mxu0 %v509
        %543 = vmatprep.subr.mxu0 0.0
        %544 = vmatpush1.msra.mxu0 %v510
        %545 = vmatprep.subr.mxu0 0.0
        %546 = vmatpush1.msra.mxu0 %v511
        %547 = vmatprep.subr.mxu0 0.0
        %548 = vmatpush1.msra.mxu0 %v512
        %549 = vmatprep.subr.mxu0 0.0
        %550 = vmatpush1.msra.mxu0 %v513
        %551 = vmatprep.subr.mxu0 0.0
        %552 = vmatpush1.msra.mxu0 %v514
        %553 = vmatprep.subr.mxu0 0.0
        %554 = vmatpush1.msra.mxu0 %v515
        %555 = vmatprep.subr.mxu0 0.0
        %556 = vmatpush1.msra.mxu0 0.0
        %557 = vmatprep.subr.mxu0 0.0
        %558 = vmatpush1.msra.mxu0 0.0
        %559 = vmatprep.subr.mxu0 0.0
        %560 = vmatpush1.msra.mxu0 0.0
        %561 = vmatprep.subr.mxu0 0.0
        %562 = vmatpush1.msra.mxu0 0.0
        %563 = vmatprep.subr.mxu0 0.0
        %564 = vmatpush1.msra.mxu0 0.0
        %565 = vmatprep.subr.mxu0 0.0
        %566 = vmatpush1.msra.mxu0 0.0
        %567 = vmatprep.subr.mxu0 0.0
        %568 = vmatpush1.msra.mxu0 0.0
        %569 = vmatprep.subr.mxu0 0.0
        %570 = vmatpush1.msra.mxu0 0.0
        %571 = vmatprep.subr.mxu0 0.0
        %572 = vmatpush1.msra.mxu0 0.0
        %573 = vmatprep.subr.mxu0 0.0
        %574 = vmatpush1.msra.mxu0 0.0
        %575 = vmatprep.subr.mxu0 0.0
        %576 = vmatpush1.msra.mxu0 0.0
        %577 = vmatprep.subr.mxu0 0.0
        %578 = vmatpush1.msra.mxu0 0.0
        %579 = vmatprep.subr.mxu0 0.0
        %580 = vmatpush1.msra.mxu0 0.0
        %581 = vmatprep.subr.mxu0 0.0
        %582 = vmatpush1.msra.mxu0 0.0
        %583 = vmatprep.subr.mxu0 0.0
        %584 = vmatpush1.msra.mxu0 0.0
        %585 = vmatprep.subr.mxu0 0.0
        %586 = vmatpush1.msra.mxu0 0.0
        %587 = vmatprep.mubr.f32.mxu0 0.0
        %588 = vmatmul.mubr.f32.gmra.mrb[0].mxu0 %v496
        %v589 = vpop.f32.mrb[0].mxu0
        %v590 = vadd.f32 %v521, %v589
        %v591 = vpop.f32.mrb[0].mxu0
        %592 = vmatprep.mubr.f32.mxu0 0.0
        %593 = vmatmul.mubr.f32.gmra.mrb[0].mxu0 %v497
        %v594 = vpop.f32.mrb[0].mxu0
        %v595 = vadd.f32 %v521, %v594
        %v596 = vpop.f32.mrb[0].mxu0
        %597 = vmatprep.mubr.f32.mxu0 0.0
        %598 = vmatmul.mubr.f32.gmra.mrb[0].mxu0 %v498
        %v599 = vpop.f32.mrb[0].mxu0
        %v600 = vadd.f32 %v521, %v599
        %v601 = vpop.f32.mrb[0].mxu0
        %602 = vmatprep.mubr.f32.mxu0 0.0
        %603 = vmatmul.mubr.f32.gmra.mrb[0].mxu0 %v499
        %v604 = vpop.f32.mrb[0].mxu0
        %v605 = vadd.f32 %v521, %v604
        %v606 = vpop.f32.mrb[0].mxu0
        %607 = vdwg.mxu0
        %v608 = vtanh.pop %v590
        %v609 = vtanh.pop %v595
        %v610 = vtanh.pop %v600
        %v611 = vtanh.pop %v605
        %v612 = vmul.f32 %v608, %v608
        %v613 = vmul.f32 %v609, %v609
        %v614 = vmul.f32 %v610, %v610
        %v615 = vmul.f32 %v611, %v611
        %v616 = vsub.f32 1.0, %v612
        %v617 = vsub.f32 1.0, %v613
        %v618 = vsub.f32 1.0, %v614
        %v619 = vsub.f32 1.0, %v615
        %v620 = vld [vmem:[%s6] sm:$0x1]
        %v622 = vlaneseq
        %v623 = vshrl.u32 %v622, 7
        %v624 = vsub.s32 0, %v623
        %v625 = vrot.slane %v620, %v624
        %v627 = vmul.f32 %v616, %v625
        %v628 = vmul.f32 %v617, %v625
        %v629 = vmul.f32 %v618, %v625
        %v630 = vmul.f32 %v619, %v625
        %v631 = vld [vmem:[#allocation7] sm:$0xff]
        %v632 = vld [vmem:[#allocation7 + $0x8] sm:$0xff]
        %v633 = vld [vmem:[#allocation7 + $0x10] sm:$0xff]
        %v634 = vld [vmem:[#allocation7 + $0x18] sm:$0xff]
        %v635 = vld [vmem:[#allocation7 + $0x20] sm:$0xff]
        %v636 = vld [vmem:[#allocation7 + $0x28] sm:$0xff]
        %v637 = vld [vmem:[#allocation7 + $0x30] sm:$0xff]
        %v638 = vld [vmem:[#allocation7 + $0x38] sm:$0xff]
        %v639 = vld [vmem:[#allocation7 + $0x40] sm:$0xff]
        %v640 = vld [vmem:[#allocation7 + $0x48] sm:$0xff]
        %v641 = vld [vmem:[#allocation7 + $0x50] sm:$0xff]
        %v642 = vld [vmem:[#allocation7 + $0x58] sm:$0xff]
        %v643 = vld [vmem:[#allocation7 + $0x60] sm:$0xff]
        %v644 = vld [vmem:[#allocation7 + $0x68] sm:$0xff]
        %v645 = vld [vmem:[#allocation7 + $0x70] sm:$0xff]
        %v646 = vld [vmem:[#allocation7 + $0x78] sm:$0xff]
        %647 = vmatprep.subr.mxu0 0.0
        %648 = vmatpush1.msra.mxu0 %v631
        %649 = vmatprep.subr.mxu0 0.0
        %650 = vmatpush1.msra.mxu0 %v632
        %651 = vmatprep.subr.mxu0 0.0
        %652 = vmatpush1.msra.mxu0 %v633
        %653 = vmatprep.subr.mxu0 0.0
        %654 = vmatpush1.msra.mxu0 %v634
        %655 = vmatprep.subr.mxu0 0.0
        %656 = vmatpush1.msra.mxu0 %v635
        %657 = vmatprep.subr.mxu0 0.0
        %658 = vmatpush1.msra.mxu0 %v636
        %659 = vmatprep.subr.mxu0 0.0
        %660 = vmatpush1.msra.mxu0 %v637
        %661 = vmatprep.subr.mxu0 0.0
        %662 = vmatpush1.msra.mxu0 %v638
        %663 = vmatprep.subr.mxu0 0.0
        %664 = vmatpush1.msra.mxu0 %v639
        %665 = vmatprep.subr.mxu0 0.0
        %666 = vmatpush1.msra.mxu0 %v640
        %667 = vmatprep.subr.mxu0 0.0
        %668 = vmatpush1.msra.mxu0 %v641
        %669 = vmatprep.subr.mxu0 0.0
        %670 = vmatpush1.msra.mxu0 %v642
        %671 = vmatprep.subr.mxu0 0.0
        %672 = vmatpush1.msra.mxu0 %v643
        %673 = vmatprep.subr.mxu0 0.0
        %674 = vmatpush1.msra.mxu0 %v644
        %675 = vmatprep.subr.mxu0 0.0
        %676 = vmatpush1.msra.mxu0 %v645
        %677 = vmatprep.subr.mxu0 0.0
        %678 = vmatpush1.msra.mxu0 %v646
        %679 = vmatprep.subr.mxu0 0.0
        %680 = vmatpush1.msra.mxu0 0.0
        %681 = vmatprep.subr.mxu0 0.0
        %682 = vmatpush1.msra.mxu0 0.0
        %683 = vmatprep.subr.mxu0 0.0
        %684 = vmatpush1.msra.mxu0 0.0
        %685 = vmatprep.subr.mxu0 0.0
        %686 = vmatpush1.msra.mxu0 0.0
        %687 = vmatprep.subr.mxu0 0.0
        %688 = vmatpush1.msra.mxu0 0.0
        %689 = vmatprep.subr.mxu0 0.0
        %690 = vmatpush1.msra.mxu0 0.0
        %691 = vmatprep.subr.mxu0 0.0
        %692 = vmatpush1.msra.mxu0 0.0
        %693 = vmatprep.subr.mxu0 0.0
        %694 = vmatpush1.msra.mxu0 0.0
        %695 = vmatprep.subr.mxu0 0.0
        %696 = vmatpush1.msra.mxu0 0.0
        %697 = vmatprep.subr.mxu0 0.0
        %698 = vmatpush1.msra.mxu0 0.0
        %699 = vmatprep.subr.mxu0 0.0
        %700 = vmatpush1.msra.mxu0 0.0
        %701 = vmatprep.subr.mxu0 0.0
        %702 = vmatpush1.msra.mxu0 0.0
        %703 = vmatprep.subr.mxu0 0.0
        %704 = vmatpush1.msra.mxu0 0.0
        %705 = vmatprep.subr.mxu0 0.0
        %706 = vmatpush1.msra.mxu0 0.0
        %707 = vmatprep.subr.mxu0 0.0
        %708 = vmatpush1.msra.mxu0 0.0
        %709 = vmatprep.subr.mxu0 0.0
        %710 = vmatpush1.msra.mxu0 0.0
        %711 = vmatprep.mubr.f32.mxu0 0.0
        %712 = vmatmul.mubr.f32.gmra.mrb[0].mxu0 %v627
        %v713 = vpop.f32.mrb[0].mxu0
        %v714 = vadd.f32 0.0, %v713
        %v715 = vpop.f32.mrb[0].mxu0
        %716 = vmatprep.mubr.f32.mxu0 0.0
        %717 = vmatmul.mubr.f32.gmra.mrb[0].mxu0 %v628
        %v718 = vpop.f32.mrb[0].mxu0
        %v719 = vadd.f32 0.0, %v718
        %v720 = vpop.f32.mrb[0].mxu0
        %721 = vmatprep.mubr.f32.mxu0 0.0
        %722 = vmatmul.mubr.f32.gmra.mrb[0].mxu0 %v629
        %v723 = vpop.f32.mrb[0].mxu0
        %v724 = vadd.f32 0.0, %v723
        %v725 = vpop.f32.mrb[0].mxu0
        %726 = vmatprep.mubr.f32.mxu0 0.0
        %727 = vmatmul.mubr.f32.gmra.mrb[0].mxu0 %v630
        %v728 = vpop.f32.mrb[0].mxu0
        %v729 = vadd.f32 0.0, %v728
        %v730 = vpop.f32.mrb[0].mxu0
        %731 = vdwg.mxu0
        %v732 = vmul.f32 %v714, %v627
        %v733 = vmul.f32 %v719, %v628
        %v734 = vmul.f32 %v724, %v629
        %v735 = vmul.f32 %v729, %v630
        %v736 = vlaneseq
        %v737 = vshrl.u32 %v736, 7
        %v738 = vadd.s32 %v737, 8
        %v739 = vld [vmem:[%s428] sm:$0xff]
        %v740 = vld [vmem:[%s428 + $0x8] sm:$0xff]
        %v741 = vld [vmem:[%s428 + $0x10] sm:$0xff]
        %v742 = vld [vmem:[%s428 + $0x18] sm:$0xff]
        %vm743 = vcmp.lt.s32.totalorder %v737, %v739
        %vm744 = vcmp.lt.s32.totalorder %v738, %v740
        %vm745 = vcmp.lt.s32.totalorder %v737, %v741
        %vm746 = vcmp.lt.s32.totalorder %v738, %v742
        %v747 = vsel %vm743, 1, 0
        %v748 = vsel %vm744, 1, 0
        %v749 = vsel %vm745, 1, 0
        %v750 = vsel %vm746, 1, 0
        %v751 = vcvt.s32.f32 %v747
        %v752 = vcvt.s32.f32 %v748
        %v753 = vcvt.s32.f32 %v749
        %v754 = vcvt.s32.f32 %v750
        %756 = vset.pattern.permute.xlu0 0
        %757 = vperm.xlu0 %756, %v751
        %v758 = vpop.permute.xlu0 %757
        %761 = vset.pattern.permute.xlu0 0
        %762 = vperm.xlu0 %761, %v752
        %v763 = vpop.permute.xlu0 %762
        %766 = vset.pattern.permute.xlu0 0
        %767 = vperm.xlu0 %766, %v753
        %v768 = vpop.permute.xlu0 %767
        %771 = vset.pattern.permute.xlu0 0
        %772 = vperm.xlu0 %771, %v754
        %v773 = vpop.permute.xlu0 %772
        %v775 = vmul.f32 %v732, %v758
        %v776 = vmul.f32 %v733, %v763
        %v777 = vmul.f32 %v734, %v768
        %v778 = vmul.f32 %v735, %v773
        %779 = vadd.xlane.f32.xlu0 %v775
        %v780 = vpop.xlane.xlu0 %779
        %781 = vadd.xlane.f32.xlu0 %v776
        %v782 = vpop.xlane.xlu0 %781
        %783 = vadd.xlane.f32.xlu0 %v777
        %v784 = vpop.xlane.xlu0 %783
        %785 = vadd.xlane.f32.xlu0 %v778
        %v786 = vpop.xlane.xlu0 %785
        %v791 = vlaneseq
        %v792 = vand.u32 %v791, 127
        %v793 = vlaneseq
        %v794 = vshrl.u32 %v793, 7
        %v795 = vsub.s32 %v792, %v794
        %v796 = vrot.slane %v780, %v795
        %v797 = vadd.s32 %v792, 4294967288
        %v798 = vlaneseq
        %v799 = vshrl.u32 %v798, 7
        %v800 = vsub.s32 %v797, %v799
        %v801 = vrot.slane %v782, %v800
        %vm802 = vcmask 130112
        %v803 = vsel %vm802, %v801, %v796
        %v804 = vlaneseq
        %v805 = vshrl.u32 %v804, 7
        %v806 = vsub.s32 %v792, %v805
        %v807 = vrot.slane %v784, %v806
        %v808 = vlaneseq
        %v809 = vshrl.u32 %v808, 7
        %v810 = vsub.s32 %v797, %v809
        %v811 = vrot.slane %v786, %v810
        %v812 = vsel %vm802, %v811, %v807
        %vm813 = vcmask 1041409
        %v814 = vsel %vm813, %v812, %v803
        %vm816 = vcmask 123904
        %v817 = vsel %vm816, %v814, 0.0
        %818 = vadd.xlane.f32.xlu0 %v817
        %v819 = vpop.xlane.xlu0 %818
        %v820 = vrsqrt.pop %v819
        %v821 = vmul.f32 %v819, %v820
        %vm822 = vcmp.eq.f32.partialorder %v819, inf
        %v823 = vsel %vm822, %v819, %v821
        %vm824 = vcmp.eq.f32.partialorder %v819, 0.0
        %v825 = vand.u32 %v819, 2147483648
        %v826 = vsel %vm824, %v825, %v823
        %v827 = vsub.f32 %v826, 1.0
        %v828 = vmul.f32 %v827, %v827
        %829 = vst [vmem:[%s415] sm:$0x3] %v828
        %s830 = sand.u32 %s224, 1
        %s831 = scalar_lea.sflag [#allocation4], %s830
        %s832 = sand.u32 %s224, 1
        %s833 = smul.addr %s832, 2
        %s834 = scalar_lea.vmem [#allocation8], %s833
        // Predicated region
        $region65: #{tpu_custom_call.1} parent=51 // pred_check
          %p835 = pneg %p234
        $region66: #{tpu_custom_call.1} parent=51 // pred_check_branch
          %837 = sbr.rel (%p835) target = $region68
        $region67: #{tpu_custom_call.1} parent=51 // pred_region
          %s839 = ssub.s32 32, 32
          %840 = vsyncadd %s831, %s839
          %s841 = smul.addr %s28, 32
          %s842 = scalar_lea.hbm %s8, %s841
          %s844 = sshll.u32 %s834, 4
          %s845 = int_to_ptr.vmem [resolvable:$true] %s844
          %847 = dma.vmem_to_hbm [thread:$0]  %s845, 32, %s842, %s831
        $region68: #{tpu_custom_call.1} parent=51 // pred_fallthru
          _
      $region52: #{tpu_custom_call.1} parent=5 // pred_fallthru
        _
      %p848 = scmp.le.s32.totalorder 2, %s23
      // Predicated region
      $region69: #{tpu_custom_call.1} parent=5 // pred_check
        %p849 = pneg %p848
      $region70: #{tpu_custom_call.1} parent=5 // pred_check_branch
        %851 = sbr.rel (%p849) target = $region72
      $region71: #{tpu_custom_call.1} parent=5 // pred_region
        %s852 = ssub.s32 %s23, 2
        // Predicated region
        $region73: #{tpu_custom_call.1} parent=71 // pred_check
          %p853 = pneg %p240
        $region74: #{tpu_custom_call.1} parent=71 // pred_check_branch
          %855 = sbr.rel (%p853) target = $region76
        $region75: #{tpu_custom_call.1} parent=71 // pred_region
          %s856 = sand.u32 %s225, 1
          %s857 = scalar_lea.sflag [#allocation4], %s856
          %s858 = sand.u32 %s225, 1
          %s859 = smul.addr %s858, 2
          %s860 = scalar_lea.vmem [#allocation8], %s859
          %861 = dma.done %s857, 32
        $region76: #{tpu_custom_call.1} parent=71 // pred_fallthru
          _
      $region72: #{tpu_custom_call.1} parent=5 // pred_fallthru
        _
    $region6: #{tpu_custom_call.1} parent=1 // loop_footer
      %s27 = sadd.s32 1, %s23
    $region7: #{tpu_custom_call.1} parent=1 // loop_footer_branch
      %22 = sbr.rel target = $region3
    $region8: #{tpu_custom_call.1} parent=1 // loop_exit
      _
    %862 = vsyncpa [#allocation3], 1
    %s863 = scalar_lea.sflag [#allocation3], 1
    %864 = vsyncpa %s863, 1
    %865 = vsyncpa [#allocation6], 1
    %s866 = scalar_lea.sflag [#allocation6], 1
    %867 = vsyncpa %s866, 1
    %868 = vsyncpa [#allocation4], 1
    %s869 = scalar_lea.sflag [#allocation4], 1
    %870 = vsyncpa %s869, 1

</llo_original>
